<compile_context>
chip_gen: v7x
topology: tpu7x:2x2x1
jax: 0.10.0
libtpu: 0.0.40
codegen_flags: <defaults>
</compile_context>

<pallas_src>
import jax
import jax.numpy as jnp
import numpy as np
from jax.experimental import pallas as pl
from jax.experimental.pallas import tpu as pltpu

INF = 10000000000.0
LN_EPS = 1e-5          # torch.nn.LayerNorm default
LEAKY_SLOPE = 0.01     # torch.nn.LeakyReLU default negative_slope
FF_HIDDEN = 3072       # fixed hidden width from FeedForward
VMEM_LIMIT = 64 * 1024 * 1024


def _pick_tile(n, candidates=(256, 128)):
    """Largest candidate that divides n, else the full extent (keeps (8,128) rule)."""
    for c in candidates:
        if n % c == 0:
            return c
    return n


def _layer_norm(x, gamma, beta):
    # Biased variance over last dim, like torch.nn.LayerNorm.
    mean = jnp.mean(x, axis=-1, keepdims=True)
    var = jnp.mean((x - mean) ** 2, axis=-1, keepdims=True)
    return (x - mean) * jax.lax.rsqrt(var + LN_EPS) * gamma + beta


# --------------------- kernel 1: folded-batch QKV projection --------------------- #
def qkv_kernel(x_ref, wq_ref, wk_ref, wv_ref, q_ref, k_ref, v_ref):
    x = x_ref[...].astype(jnp.bfloat16)          # (TM, E) bf16
    q_ref[...] = jnp.dot(x, wq_ref[...],
                         preferred_element_type=jnp.float32).astype(q_ref.dtype)
    k_ref[...] = jnp.dot(x, wk_ref[...],
                         preferred_element_type=jnp.float32).astype(k_ref.dtype)
    v_ref[...] = jnp.dot(x, wv_ref[...],
                         preferred_element_type=jnp.float32).astype(v_ref.dtype)


# --------------------- kernel 2: causal masked attention ------------------------- #
def attention_kernel(q_ref, k_ref, v_ref, m_ref, o_ref):
    qi = pl.program_id(1)
    q = q_ref[...]                               # (TQ, E) bf16
    k = k_ref[...]                               # (S,  E) bf16
    v = v_ref[...]                               # (S,  E) bf16
    tq, s = q.shape[0], k.shape[0]

    # scores = q @ k.T without materializing a transposed k tile.
    scores = jax.lax.dot_general(
        q, k, (((1,), (1,)), ((), ())),
        preferred_element_type=jnp.float32)      # (TQ, S) f32

    row = qi * tq + jax.lax.broadcasted_iota(jnp.int32, (tq, s), 0)
    col = jax.lax.broadcasted_iota(jnp.int32, (tq, s), 1)
    invalid = (col > row) | (m_ref[...] == 0.0)  # causal | padding, (1,S) broadcasts
    scores = jnp.where(invalid, -INF, scores)

    # softmax(dim=-1), unscaled (scaled_attention=False), f32 math.
    scores = scores - jnp.max(scores, axis=-1, keepdims=True)
    e = jnp.exp(scores)
    p = e * pl.reciprocal(jnp.sum(e, axis=-1, keepdims=True), approx=True)

    o_ref[...] = jnp.dot(p.astype(jnp.bfloat16), v,
                         preferred_element_type=jnp.float32)


# ----------- kernel 3: residual + LN1 + chunked FFN + residual + LN2 ------------- #
def ffn_ln_kernel(attn_ref, x_ref, g1_ref, b1_ref,
                  w1_ref, fb1_ref, w2_ref, fb2_ref,
                  g2_ref, b2_ref, o_ref, h1_s, acc_s):
    hc = pl.program_id(1)

    @pl.when(hc == 0)
    def _():
        h1_s[...] = _layer_norm(attn_ref[...] + x_ref[...],
                                g1_ref[...], b1_ref[...])
        acc_s[...] = jnp.zeros_like(acc_s)

    h1 = h1_s[...]                                                  # (TM, E) f32
    hid = jnp.dot(h1.astype(jnp.bfloat16), w1_ref[...],
                  preferred_element_type=jnp.float32) + fb1_ref[...]  # (TM, HC)
    hid = jnp.where(hid >= 0.0, hid, LEAKY_SLOPE * hid)             # LeakyReLU
    acc_s[...] += jnp.dot(hid.astype(jnp.bfloat16), w2_ref[...],
                          preferred_element_type=jnp.float32)       # (TM, E)

    @pl.when(hc == pl.num_programs(1) - 1)
    def _():
        ff = acc_s[...] + fb2_ref[...]
        o_ref[...] = _layer_norm(ff + h1, g2_ref[...], b2_ref[...])


def causal_transformer_layer(x, attention_mask, params):
    B, S, E = x.shape
    N = B * S
    x2d = x.reshape(N, E).astype(jnp.float32)
    mask3 = attention_mask.reshape(B, 1, S).astype(jnp.float32)

    bf = lambda a: a.astype(jnp.bfloat16)
    wq, wk, wv = bf(params["wq"]), bf(params["wk"]), bf(params["wv"])
    w1, w2 = bf(params["w1"]), bf(params["w2"])

    TM = _pick_tile(N)                        # row tile for position-wise matmuls
    TQ = _pick_tile(S)                        # query tile for attention
    HC = _pick_tile(FF_HIDDEN, (512, 256, 128))   # FFN hidden chunk

    # 1) QKV projection over folded (B*S, E) rows.
    q2d, k2d, v2d = pl.pallas_call(
        qkv_kernel,
        out_shape=tuple(jax.ShapeDtypeStruct((N, E), jnp.bfloat16) for _ in range(3)),
        grid_spec=pltpu.PrefetchScalarGridSpec(
            num_scalar_prefetch=0,
            grid=(N // TM,),
            in_specs=[
                pl.BlockSpec((TM, E), lambda i: (i, 0)),
                pl.BlockSpec((E, E), lambda i: (0, 0)),
                pl.BlockSpec((E, E), lambda i: (0, 0)),
                pl.BlockSpec((E, E), lambda i: (0, 0)),
            ],
            out_specs=tuple(pl.BlockSpec((TM, E), lambda i: (i, 0)) for _ in range(3)),
        ),
        compiler_params=pltpu.CompilerParams(
            dimension_semantics=("parallel",),
            vmem_limit_bytes=VMEM_LIMIT),
    )(x2d, wq, wk, wv)

    q = q2d.reshape(B, S, E)
    k = k2d.reshape(B, S, E)
    v = v2d.reshape(B, S, E)

    # 2) attention, tiled over (batch, query tile); K/V resident per batch.
    attn = pl.pallas_call(
        attention_kernel,
        out_shape=jax.ShapeDtypeStruct((B, S, E), jnp.float32),
        grid_spec=pltpu.PrefetchScalarGridSpec(
            num_scalar_prefetch=0,
            grid=(B, S // TQ),
            in_specs=[
                pl.BlockSpec((None, TQ, E), lambda b, qi: (b, qi, 0)),  # q tile
                pl.BlockSpec((None, S, E), lambda b, qi: (b, 0, 0)),    # k (full)
                pl.BlockSpec((None, S, E), lambda b, qi: (b, 0, 0)),    # v (full)
                pl.BlockSpec((None, 1, S), lambda b, qi: (b, 0, 0)),    # padding mask
            ],
            out_specs=pl.BlockSpec((None, TQ, E), lambda b, qi: (b, qi, 0)),
        ),
        compiler_params=pltpu.CompilerParams(
            dimension_semantics=("parallel", "parallel"),
            vmem_limit_bytes=VMEM_LIMIT),
    )(q, k, v, mask3)

    attn2d = attn.reshape(N, E)

    # 3) residual + LN1 + chunked FFN + residual + LN2 over folded rows.
    out2d = pl.pallas_call(
        ffn_ln_kernel,
        out_shape=jax.ShapeDtypeStruct((N, E), jnp.float32),
        grid_spec=pltpu.PrefetchScalarGridSpec(
            num_scalar_prefetch=0,
            grid=(N // TM, FF_HIDDEN // HC),
            in_specs=[
                pl.BlockSpec((TM, E), lambda i, h: (i, 0)),     # attention output
                pl.BlockSpec((TM, E), lambda i, h: (i, 0)),     # residual x
                pl.BlockSpec((1, E), lambda i, h: (0, 0)),      # ln1 gamma
                pl.BlockSpec((1, E), lambda i, h: (0, 0)),      # ln1 beta
                pl.BlockSpec((E, HC), lambda i, h: (0, h)),     # ff w1 chunk (bf16)
                pl.BlockSpec((1, HC), lambda i, h: (0, h)),     # ff b1 chunk
                pl.BlockSpec((HC, E), lambda i, h: (h, 0)),     # ff w2 chunk (bf16)
                pl.BlockSpec((1, E), lambda i, h: (0, 0)),      # ff b2
                pl.BlockSpec((1, E), lambda i, h: (0, 0)),      # ln2 gamma
                pl.BlockSpec((1, E), lambda i, h: (0, 0)),      # ln2 beta
            ],
            out_specs=pl.BlockSpec((TM, E), lambda i, h: (i, 0)),
            scratch_shapes=[pltpu.VMEM((TM, E), jnp.float32),   # h1 (post-LN1)
                            pltpu.VMEM((TM, E), jnp.float32)],  # FFN accumulator
        ),
        compiler_params=pltpu.CompilerParams(
            dimension_semantics=("parallel", "arbitrary"),
            vmem_limit_bytes=VMEM_LIMIT),
    )(attn2d, x2d,
      params["g1"], params["b1"],
      w1, params["fb1"], w2, params["fb2"],
      params["g2"], params["b2"])

    return out2d.reshape(B, S, E)


def reference_layer(x, attention_mask, params):
    """Pure-JAX reference mirroring the PyTorch forward, using the same
    bf16-matmul-operand / f32-accumulation policy as the kernel."""
    bf16, f32 = jnp.bfloat16, jnp.float32
    dot = lambda a, b: jnp.dot(a, b, preferred_element_type=f32)

    xb = x.astype(bf16)
    q = dot(xb, params["wq"].astype(bf16)).astype(bf16)
    k = dot(xb, params["wk"].astype(bf16)).astype(bf16)
    v = dot(xb, params["wv"].astype(bf16)).astype(bf16)

    scores = jnp.einsum("bqe,bke->bqk", q, k, preferred_element_type=f32)
    S = x.shape[1]
    causal = jnp.triu(jnp.ones((S, S), f32), k=1)
    padding = 1.0 - attention_mask
    scores = scores + (causal[None] + padding[:, None, :]) * (-INF)
    p = jax.nn.softmax(scores, axis=-1)
    attn = jnp.einsum("bqk,bke->bqe", p.astype(bf16), v, preferred_element_type=f32)

    h1 = _layer_norm(attn + x, params["g1"], params["b1"])
    hid = dot(h1.astype(bf16), params["w1"].astype(bf16)) + params["fb1"]
    hid = jnp.where(hid >= 0.0, hid, LEAKY_SLOPE * hid)
    ff = dot(hid.astype(bf16), params["w2"].astype(bf16)) + params["fb2"]
    return _layer_norm(ff + h1, params["g2"], params["b2"])


def init_params(key, embed_dim):
    ks = jax.random.split(key, 8)
    s_e = 1.0 / np.sqrt(embed_dim)
    s_f = 1.0 / np.sqrt(FF_HIDDEN)
    return {
        "wq": jax.random.normal(ks[0], (embed_dim, embed_dim), jnp.float32) * s_e,
        "wk": jax.random.normal(ks[1], (embed_dim, embed_dim), jnp.float32) * s_e,
        "wv": jax.random.normal(ks[2], (embed_dim, embed_dim), jnp.float32) * s_e,
        "g1": jnp.ones((1, embed_dim), jnp.float32),
        "b1": jnp.zeros((1, embed_dim), jnp.float32),
        "w1": jax.random.normal(ks[3], (embed_dim, FF_HIDDEN), jnp.float32) * s_e,
        "fb1": jax.random.normal(ks[4], (1, FF_HIDDEN), jnp.float32) * s_e,
        "w2": jax.random.normal(ks[5], (FF_HIDDEN, embed_dim), jnp.float32) * s_f,
        "fb2": jax.random.normal(ks[6], (1, embed_dim), jnp.float32) * s_f,
        "g2": jnp.ones((1, embed_dim), jnp.float32),
        "b2": jnp.zeros((1, embed_dim), jnp.float32),
    }


if __name__ == "__main__":
    B, S, E = 2, 8, 32
    key = jax.random.PRNGKey(0)
    k_x, k_p = jax.random.split(key)

    x = jax.random.normal(k_x, (B, S, E), jnp.float32)
    # batch 0: all tokens valid; batch 1: last 3 tokens are padding
    attention_mask = jnp.array(
        [[1.0] * S,
         [1.0] * (S - 3) + [0.0] * 3], dtype=jnp.float32)

    params = init_params(k_p, E)

    out = causal_transformer_layer(x, attention_mask, params)
    out = jax.block_until_ready(out)

    ref = reference_layer(x, attention_mask, params)
    np.testing.assert_allclose(np.asarray(out), np.asarray(ref, dtype=np.float32),
                               rtol=1e-2, atol=1e-2)
    print("KERNEL_OK")
</pallas_src>

<mosaic_0001>
module attributes {stable_mosaic.version = 11 : i64} {
  func.func @qkv_kernel(%arg0: i32, %arg1: memref<16x32xf32, #tpu.memory_space<vmem>>, %arg2: memref<32x32xbf16, #tpu.memory_space<vmem>>, %arg3: memref<32x32xbf16, #tpu.memory_space<vmem>>, %arg4: memref<32x32xbf16, #tpu.memory_space<vmem>>, %arg5: memref<16x32xbf16, #tpu.memory_space<vmem>>, %arg6: memref<16x32xbf16, #tpu.memory_space<vmem>>, %arg7: memref<16x32xbf16, #tpu.memory_space<vmem>>) attributes {dimension_semantics = [#tpu.dimension_semantics<parallel>], iteration_bounds = array<i64: 1>, scalar_prefetch = 0 : i64, scratch_operands = 0 : i64, tpu.core_type = #tpu.core_type<tc>, window_params = [{transform_indices = @transform_0, window_bounds = array<i64: 16, 32>}, {pipeline_mode = #tpu.pipeline_mode<synchronous>, transform_indices = @transform_1, window_bounds = array<i64: 32, 32>}, {pipeline_mode = #tpu.pipeline_mode<synchronous>, transform_indices = @transform_2, window_bounds = array<i64: 32, 32>}, {pipeline_mode = #tpu.pipeline_mode<synchronous>, transform_indices = @transform_3, window_bounds = array<i64: 32, 32>}, {transform_indices = @transform_4, window_bounds = array<i64: 16, 32>}, {transform_indices = @transform_5, window_bounds = array<i64: 16, 32>}, {transform_indices = @transform_6, window_bounds = array<i64: 16, 32>}]} {
    %c0 = arith.constant 0 : index
    %c0_0 = arith.constant 0 : index
    %0 = vector.load %arg1[%c0, %c0_0] : memref<16x32xf32, #tpu.memory_space<vmem>>, vector<16x32xf32>
    %1 = arith.truncf %0 : vector<16x32xf32> to vector<16x32xbf16>
    %c0_1 = arith.constant 0 : index
    %c0_2 = arith.constant 0 : index
    %2 = vector.load %arg2[%c0_1, %c0_2] : memref<32x32xbf16, #tpu.memory_space<vmem>>, vector<32x32xbf16>
    %cst = arith.constant dense<0.000000e+00> : vector<16x32xf32>
    %3 = tpu.matmul %1, %2, %cst {dimension_numbers = #tpu.dot_dimension_numbers<[1], [0], [0], [1], [0, 0, 1, 1], [], []>} : vector<16x32xbf16>, vector<32x32xbf16>, vector<16x32xf32> -> vector<16x32xf32>
    %4 = arith.truncf %3 : vector<16x32xf32> to vector<16x32xbf16>
    %c0_3 = arith.constant 0 : index
    %c0_4 = arith.constant 0 : index
    %5 = vector.load %arg5[%c0_3, %c0_4] : memref<16x32xbf16, #tpu.memory_space<vmem>>, vector<16x32xbf16>
    tpu.vector_store %arg5[%c0_3, %c0_4], %4 {strides = array<i32>} : memref<16x32xbf16, #tpu.memory_space<vmem>>, vector<16x32xbf16>,
    %c0_5 = arith.constant 0 : index
    %c0_6 = arith.constant 0 : index
    %6 = vector.load %arg3[%c0_5, %c0_6] : memref<32x32xbf16, #tpu.memory_space<vmem>>, vector<32x32xbf16>
    %cst_7 = arith.constant dense<0.000000e+00> : vector<16x32xf32>
    %7 = tpu.matmul %1, %6, %cst_7 {dimension_numbers = #tpu.dot_dimension_numbers<[1], [0], [0], [1], [0, 0, 1, 1], [], []>} : vector<16x32xbf16>, vector<32x32xbf16>, vector<16x32xf32> -> vector<16x32xf32>
    %8 = arith.truncf %7 : vector<16x32xf32> to vector<16x32xbf16>
    %c0_8 = arith.constant 0 : index
    %c0_9 = arith.constant 0 : index
    %9 = vector.load %arg6[%c0_8, %c0_9] : memref<16x32xbf16, #tpu.memory_space<vmem>>, vector<16x32xbf16>
    tpu.vector_store %arg6[%c0_8, %c0_9], %8 {strides = array<i32>} : memref<16x32xbf16, #tpu.memory_space<vmem>>, vector<16x32xbf16>,
    %c0_10 = arith.constant 0 : index
    %c0_11 = arith.constant 0 : index
    %10 = vector.load %arg4[%c0_10, %c0_11] : memref<32x32xbf16, #tpu.memory_space<vmem>>, vector<32x32xbf16>
    %cst_12 = arith.constant dense<0.000000e+00> : vector<16x32xf32>
    %11 = tpu.matmul %1, %10, %cst_12 {dimension_numbers = #tpu.dot_dimension_numbers<[1], [0], [0], [1], [0, 0, 1, 1], [], []>} : vector<16x32xbf16>, vector<32x32xbf16>, vector<16x32xf32> -> vector<16x32xf32>
    %12 = arith.truncf %11 : vector<16x32xf32> to vector<16x32xbf16>
    %c0_13 = arith.constant 0 : index
    %c0_14 = arith.constant 0 : index
    %13 = vector.load %arg7[%c0_13, %c0_14] : memref<16x32xbf16, #tpu.memory_space<vmem>>, vector<16x32xbf16>
    tpu.vector_store %arg7[%c0_13, %c0_14], %12 {strides = array<i32>} : memref<16x32xbf16, #tpu.memory_space<vmem>>, vector<16x32xbf16>,
    return
  }
  func.func @transform_0(%arg0: i32) -> (i32, i32) {
    %c0_i32 = arith.constant 0 : i32
    %c0_i32_0 = arith.constant 0 : i32
    return %arg0, %c0_i32 : i32, i32
  }
  func.func @transform_1(%arg0: i32) -> (i32, i32) {
    %c0_i32 = arith.constant 0 : i32
    %c0_i32_0 = arith.constant 0 : i32
    %c0_i32_1 = arith.constant 0 : i32
    return %c0_i32, %c0_i32_0 : i32, i32
  }
  func.func @transform_2(%arg0: i32) -> (i32, i32) {
    %c0_i32 = arith.constant 0 : i32
    %c0_i32_0 = arith.constant 0 : i32
    %c0_i32_1 = arith.constant 0 : i32
    return %c0_i32, %c0_i32_0 : i32, i32
  }
  func.func @transform_3(%arg0: i32) -> (i32, i32) {
    %c0_i32 = arith.constant 0 : i32
    %c0_i32_0 = arith.constant 0 : i32
    %c0_i32_1 = arith.constant 0 : i32
    return %c0_i32, %c0_i32_0 : i32, i32
  }
  func.func @transform_4(%arg0: i32) -> (i32, i32) {
    %c0_i32 = arith.constant 0 : i32
    %c0_i32_0 = arith.constant 0 : i32
    return %arg0, %c0_i32 : i32, i32
  }
  func.func @transform_5(%arg0: i32) -> (i32, i32) {
    %c0_i32 = arith.constant 0 : i32
    %c0_i32_0 = arith.constant 0 : i32
    return %arg0, %c0_i32 : i32, i32
  }
  func.func @transform_6(%arg0: i32) -> (i32, i32) {
    %c0_i32 = arith.constant 0 : i32
    %c0_i32_0 = arith.constant 0 : i32
    return %arg0, %c0_i32 : i32, i32
  }
}

</mosaic_0001>

<llo_original>
// kernel: tpu_custom_call.1
$region0: #{tpu_custom_call.1}
  #allocation0 [shape = 'u32[]', space=smem, size = 0x4, offset = 0x4, fixed_abs, tag = 'smem constant byte address 0x4 - core index']
  #allocation1 [shape = 'u32[144,128]{1,0:T(1,128)}', space=vmem, size = 0x12000, scoped, tag = 'internal scratch']
  %s0 = inlined_call_operand.hbm [shape: f32[16,32], index: 0, kind: input, shape index: {}]
  %s1 = inlined_call_operand.hbm [shape: bf16[32,32], index: 1, kind: input, shape index: {}]
  %s2 = inlined_call_operand.hbm [shape: bf16[32,32], index: 2, kind: input, shape index: {}]
  %s3 = inlined_call_operand.hbm [shape: bf16[32,32], index: 3, kind: input, shape index: {}]
  %s4 = inlined_call_operand.hbm [shape: bf16[16,32], index: 4, kind: output, shape index: {0}]
  %s5 = inlined_call_operand.hbm [shape: bf16[16,32], index: 5, kind: output, shape index: {1}]
  %s6 = inlined_call_operand.hbm [shape: bf16[16,32], index: 6, kind: output, shape index: {2}]
  %7 = xla_tuple %s4, %s5, %s6
  %s8 = sld [smem:[#allocation0]]
  $region58: #{tpu_custom_call.1} parent=0
    _
  %s10 = ssub.s32 1, %s8
  %s11 = scalar_select 0, %s10, %s8
  $region1: #{tpu_custom_call.1} parent=0
    #allocation2 [shape = 'u8[8192]{0}', space=vmem, size = 0x2000, scoped, tag = 'input window, operand 0, single buffered']
    #allocation3 [shape = 's32[1]{0}', space=sflag, size = 0x4, scoped, tag = 'scoped memory for tpu_custom_call.1']
    #allocation4 [shape = 's32[1]{0}', space=sflag, size = 0x4, scoped, tag = 'scoped memory for tpu_custom_call.1']
    #allocation5 [shape = 'u8[8192]{0}', space=vmem, size = 0x2000, scoped, tag = 'input window, operand 1, single buffered']
    #allocation6 [shape = 's32[1]{0}', space=sflag, size = 0x4, scoped, tag = 'scoped memory for tpu_custom_call.1']
    #allocation7 [shape = 'u8[8192]{0}', space=vmem, size = 0x2000, scoped, tag = 'input window, operand 2, single buffered']
    #allocation8 [shape = 'u8[8192]{0}', space=vmem, size = 0x2000, scoped, tag = 'input window, operand 3, single buffered']
    #allocation9 [shape = 's32[1]{0}', space=sflag, size = 0x4, scoped, tag = 'scoped memory for tpu_custom_call.1']
    #allocation10 [shape = 'u8[4096]{0}', space=vmem, size = 0x1000, scoped, tag = 'output window, operand 0, single buffered']
    #allocation11 [shape = 'u8[4096]{0}', space=vmem, size = 0x1000, scoped, tag = 'output window, operand 1, single buffered']
    #allocation12 [shape = 's32[1]{0}', space=sflag, size = 0x4, scoped, tag = 'scoped memory for tpu_custom_call.1']
    #allocation13 [shape = 'u8[4096]{0}', space=vmem, size = 0x1000, scoped, tag = 'output window, operand 2, single buffered']
    %12 = vsyncpa [#allocation3], 0
    %13 = vsyncpa [#allocation6], 0
    %14 = vsyncpa [#allocation9], 0
    %15 = vsyncpa [#allocation4], 0
    %16 = vsyncpa [#allocation12], 0
    // Predicated region
    $region2: #{tpu_custom_call.1} parent=1 // pred_check
      _
    $region3: #{tpu_custom_call.1} parent=1 // pred_check_branch
      %18 = sbr.rel (0) target = $region5
    $region4: #{tpu_custom_call.1} parent=1 // pred_region
      %s20 = ssub.s32 256, 256
      %21 = vsyncadd [#allocation3], %s20
      %s22 = sshll.u32 [#allocation2], 4
      %s23 = int_to_ptr.vmem [resolvable:$true] %s22
      %28 = dma.hbm_to_vmem [thread:$0]  %s0, 256, %s23, [#allocation3], 128, 128, 8
    $region5: #{tpu_custom_call.1} parent=1 // pred_fallthru
      _
    // Predicated region
    $region6: #{tpu_custom_call.1} parent=1 // pred_check
      _
    $region7: #{tpu_custom_call.1} parent=1 // pred_check_branch
      %30 = sbr.rel (0) target = $region9
    $region8: #{tpu_custom_call.1} parent=1 // pred_region
      %s32 = ssub.s32 256, 256
      %33 = vsyncadd [#allocation6], %s32
      %s34 = sshll.u32 [#allocation5], 4
      %s35 = int_to_ptr.vmem [resolvable:$true] %s34
      %40 = dma.hbm_to_vmem [thread:$0]  %s1, 256, %s35, [#allocation6], 64, 64, 4
    $region9: #{tpu_custom_call.1} parent=1 // pred_fallthru
      _
    // Predicated region
    $region10: #{tpu_custom_call.1} parent=1 // pred_check
      _
    $region11: #{tpu_custom_call.1} parent=1 // pred_check_branch
      %42 = sbr.rel (0) target = $region13
    $region12: #{tpu_custom_call.1} parent=1 // pred_region
      %s44 = ssub.s32 256, 256
      %45 = vsyncadd [#allocation6], %s44
      %s46 = sshll.u32 [#allocation7], 4
      %s47 = int_to_ptr.vmem [resolvable:$true] %s46
      %52 = dma.hbm_to_vmem [thread:$0]  %s2, 256, %s47, [#allocation6], 64, 64, 4
    $region13: #{tpu_custom_call.1} parent=1 // pred_fallthru
      _
    // Predicated region
    $region14: #{tpu_custom_call.1} parent=1 // pred_check
      _
    $region15: #{tpu_custom_call.1} parent=1 // pred_check_branch
      %54 = sbr.rel (0) target = $region17
    $region16: #{tpu_custom_call.1} parent=1 // pred_region
      %s56 = ssub.s32 256, 256
      %57 = vsyncadd [#allocation9], %s56
      %s58 = sshll.u32 [#allocation8], 4
      %s59 = int_to_ptr.vmem [resolvable:$true] %s58
      %64 = dma.hbm_to_vmem [thread:$0]  %s3, 256, %s59, [#allocation9], 64, 64, 4
    $region17: #{tpu_custom_call.1} parent=1 // pred_fallthru
      _
    // Predicated region
    $region18: #{tpu_custom_call.1} parent=1 // pred_check
      _
    $region19: #{tpu_custom_call.1} parent=1 // pred_check_branch
      %66 = sbr.rel (0) target = $region21
    $region20: #{tpu_custom_call.1} parent=1 // pred_region
      %67 = dma.done [#allocation3], 256
    $region21: #{tpu_custom_call.1} parent=1 // pred_fallthru
      _
    // Predicated region
    $region22: #{tpu_custom_call.1} parent=1 // pred_check
      _
    $region23: #{tpu_custom_call.1} parent=1 // pred_check_branch
      %69 = sbr.rel (0) target = $region25
    $region24: #{tpu_custom_call.1} parent=1 // pred_region
      %70 = dma.done [#allocation6], 256
    $region25: #{tpu_custom_call.1} parent=1 // pred_fallthru
      _
    // Predicated region
    $region26: #{tpu_custom_call.1} parent=1 // pred_check
      _
    $region27: #{tpu_custom_call.1} parent=1 // pred_check_branch
      %72 = sbr.rel (0) target = $region29
    $region28: #{tpu_custom_call.1} parent=1 // pred_region
      %73 = dma.done [#allocation6], 256
    $region29: #{tpu_custom_call.1} parent=1 // pred_fallthru
      _
    // Predicated region
    $region30: #{tpu_custom_call.1} parent=1 // pred_check
      _
    $region31: #{tpu_custom_call.1} parent=1 // pred_check_branch
      %75 = sbr.rel (0) target = $region33
    $region32: #{tpu_custom_call.1} parent=1 // pred_region
      %76 = dma.done [#allocation9], 256
    $region33: #{tpu_custom_call.1} parent=1 // pred_fallthru
      _
    %v78 = vld [vmem:[#allocation2] sm:$0xff]
    %v79 = vld [vmem:[#allocation2 + $0x8] sm:$0xff]
    %v80 = vpack.c.bf16 %v79, %v78
    %v81 = vld [vmem:[#allocation5] sm:$0xf]
    %v82 = vld [vmem:[#allocation5 + $0x4] sm:$0xf]
    %v83 = vld [vmem:[#allocation5 + $0x8] sm:$0xf]
    %v84 = vld [vmem:[#allocation5 + $0xc] sm:$0xf]
    %v89 = vunpack.c.l.b16 %v81
    %v90 = vunpack.c.l.b16 %v82
    %v91 = vunpack.c.l.b16 %v83
    %v92 = vunpack.c.l.b16 %v84
    %v93 = vpack.c.b16 %v90, %v89
    %v94 = vpack.c.b16 %v92, %v91
    %vm97 = vcmask 261120
    %v99 = vsel %vm97, %v80, 0
    %101 = vmatprep.subr.bf16.mxu0 0
    %102 = vmatpush1.bf16.msra.mxu0 %v93
    %103 = vmatprep.subr.bf16.mxu0 0
    %104 = vmatpush1.bf16.msra.mxu0 %v94
    %105 = vmatprep.subr.bf16.mxu0 0
    %106 = vmatpush1.bf16.msra.mxu0 0
    %107 = vmatprep.subr.bf16.mxu0 0
    %108 = vmatpush1.bf16.msra.mxu0 0
    %109 = vmatprep.subr.bf16.mxu0 0
    %110 = vmatpush1.bf16.msra.mxu0 0
    %111 = vmatprep.subr.bf16.mxu0 0
    %112 = vmatpush1.bf16.msra.mxu0 0
    %113 = vmatprep.subr.bf16.mxu0 0
    %114 = vmatpush1.bf16.msra.mxu0 0
    %115 = vmatprep.subr.bf16.mxu0 0
    %116 = vmatpush1.bf16.msra.mxu0 0
    %117 = vmatprep.subr.bf16.mxu0 0
    %118 = vmatpush1.bf16.msra.mxu0 0
    %119 = vmatprep.subr.bf16.mxu0 0
    %120 = vmatpush1.bf16.msra.mxu0 0
    %121 = vmatprep.subr.bf16.mxu0 0
    %122 = vmatpush1.bf16.msra.mxu0 0
    %123 = vmatprep.subr.bf16.mxu0 0
    %124 = vmatpush1.bf16.msra.mxu0 0
    %125 = vmatprep.subr.bf16.mxu0 0
    %126 = vmatpush1.bf16.msra.mxu0 0
    %127 = vmatprep.subr.bf16.mxu0 0
    %128 = vmatpush1.bf16.msra.mxu0 0
    %129 = vmatprep.subr.bf16.mxu0 0
    %130 = vmatpush1.bf16.msra.mxu0 0
    %131 = vmatprep.subr.bf16.mxu0 0
    %132 = vmatpush1.bf16.msra.mxu0 0
    %133 = vmatprep.mubr.bf16.mxu0 0
    %134 = vmatmul.mubr.bf16.gmra.mrb[0].mxu0 %v99
    %v135 = vpop.f32.mrb[0].mxu0
    %v136 = vadd.f32 0.0, %v135
    %v137 = vpop.f32.mrb[0].mxu0
    %v138 = vpop.f32.mrb[0].mxu0
    %v139 = vadd.f32 0.0, %v138
    %v140 = vpop.f32.mrb[0].mxu0
    %141 = vdwg.mxu0
    %v142 = vpack.c.bf16 %v139, %v136
    %v144 = vunpack.c.l.b16 %v142
    %v145 = vunpack.c.h.b16 %v142
    %v146 = vpack.c.b16 %v144, %v144
    %v147 = vpack.c.b16 %v145, %v145
    %vm150 = vcmask 257024
    %151 = vst.msk [vmem:[#allocation10] sm:$0xf] %vm150, %v146
    %152 = vst.msk [vmem:[#allocation10 + $0x4] sm:$0xf] %vm150, %v147
    %v153 = vld [vmem:[#allocation7] sm:$0xf]
    %v154 = vld [vmem:[#allocation7 + $0x4] sm:$0xf]
    %v155 = vld [vmem:[#allocation7 + $0x8] sm:$0xf]
    %v156 = vld [vmem:[#allocation7 + $0xc] sm:$0xf]
    %v161 = vunpack.c.l.b16 %v153
    %v162 = vunpack.c.l.b16 %v154
    %v163 = vunpack.c.l.b16 %v155
    %v164 = vunpack.c.l.b16 %v156
    %v165 = vpack.c.b16 %v162, %v161
    %v166 = vpack.c.b16 %v164, %v163
    %169 = vmatprep.subr.bf16.mxu0 0
    %170 = vmatpush1.bf16.msra.mxu0 %v165
    %171 = vmatprep.subr.bf16.mxu0 0
    %172 = vmatpush1.bf16.msra.mxu0 %v166
    %173 = vmatprep.subr.bf16.mxu0 0
    %174 = vmatpush1.bf16.msra.mxu0 0
    %175 = vmatprep.subr.bf16.mxu0 0
    %176 = vmatpush1.bf16.msra.mxu0 0
    %177 = vmatprep.subr.bf16.mxu0 0
    %178 = vmatpush1.bf16.msra.mxu0 0
    %179 = vmatprep.subr.bf16.mxu0 0
    %180 = vmatpush1.bf16.msra.mxu0 0
    %181 = vmatprep.subr.bf16.mxu0 0
    %182 = vmatpush1.bf16.msra.mxu0 0
    %183 = vmatprep.subr.bf16.mxu0 0
    %184 = vmatpush1.bf16.msra.mxu0 0
    %185 = vmatprep.subr.bf16.mxu0 0
    %186 = vmatpush1.bf16.msra.mxu0 0
    %187 = vmatprep.subr.bf16.mxu0 0
    %188 = vmatpush1.bf16.msra.mxu0 0
    %189 = vmatprep.subr.bf16.mxu0 0
    %190 = vmatpush1.bf16.msra.mxu0 0
    %191 = vmatprep.subr.bf16.mxu0 0
    %192 = vmatpush1.bf16.msra.mxu0 0
    %193 = vmatprep.subr.bf16.mxu0 0
    %194 = vmatpush1.bf16.msra.mxu0 0
    %195 = vmatprep.subr.bf16.mxu0 0
    %196 = vmatpush1.bf16.msra.mxu0 0
    %197 = vmatprep.subr.bf16.mxu0 0
    %198 = vmatpush1.bf16.msra.mxu0 0
    %199 = vmatprep.subr.bf16.mxu0 0
    %200 = vmatpush1.bf16.msra.mxu0 0
    %201 = vmatprep.mubr.bf16.mxu0 0
    %202 = vmatmul.mubr.bf16.gmra.mrb[0].mxu0 %v99
    %v203 = vpop.f32.mrb[0].mxu0
    %v204 = vadd.f32 0.0, %v203
    %v205 = vpop.f32.mrb[0].mxu0
    %v206 = vpop.f32.mrb[0].mxu0
    %v207 = vadd.f32 0.0, %v206
    %v208 = vpop.f32.mrb[0].mxu0
    %209 = vdwg.mxu0
    %v210 = vpack.c.bf16 %v207, %v204
    %v212 = vunpack.c.l.b16 %v210
    %v213 = vunpack.c.h.b16 %v210
    %v214 = vpack.c.b16 %v212, %v212
    %v215 = vpack.c.b16 %v213, %v213
    %218 = vst.msk [vmem:[#allocation11] sm:$0xf] %vm150, %v214
    %219 = vst.msk [vmem:[#allocation11 + $0x4] sm:$0xf] %vm150, %v215
    %v220 = vld [vmem:[#allocation8] sm:$0xf]
    %v221 = vld [vmem:[#allocation8 + $0x4] sm:$0xf]
    %v222 = vld [vmem:[#allocation8 + $0x8] sm:$0xf]
    %v223 = vld [vmem:[#allocation8 + $0xc] sm:$0xf]
    %v228 = vunpack.c.l.b16 %v220
    %v229 = vunpack.c.l.b16 %v221
    %v230 = vunpack.c.l.b16 %v222
    %v231 = vunpack.c.l.b16 %v223
    %v232 = vpack.c.b16 %v229, %v228
    %v233 = vpack.c.b16 %v231, %v230
    %236 = vmatprep.subr.bf16.mxu0 0
    %237 = vmatpush1.bf16.msra.mxu0 %v232
    %238 = vmatprep.subr.bf16.mxu0 0
    %239 = vmatpush1.bf16.msra.mxu0 %v233
    %240 = vmatprep.subr.bf16.mxu0 0
    %241 = vmatpush1.bf16.msra.mxu0 0
    %242 = vmatprep.subr.bf16.mxu0 0
    %243 = vmatpush1.bf16.msra.mxu0 0
    %244 = vmatprep.subr.bf16.mxu0 0
    %245 = vmatpush1.bf16.msra.mxu0 0
    %246 = vmatprep.subr.bf16.mxu0 0
    %247 = vmatpush1.bf16.msra.mxu0 0
    %248 = vmatprep.subr.bf16.mxu0 0
    %249 = vmatpush1.bf16.msra.mxu0 0
    %250 = vmatprep.subr.bf16.mxu0 0
    %251 = vmatpush1.bf16.msra.mxu0 0
    %252 = vmatprep.subr.bf16.mxu0 0
    %253 = vmatpush1.bf16.msra.mxu0 0
    %254 = vmatprep.subr.bf16.mxu0 0
    %255 = vmatpush1.bf16.msra.mxu0 0
    %256 = vmatprep.subr.bf16.mxu0 0
    %257 = vmatpush1.bf16.msra.mxu0 0
    %258 = vmatprep.subr.bf16.mxu0 0
    %259 = vmatpush1.bf16.msra.mxu0 0
    %260 = vmatprep.subr.bf16.mxu0 0
    %261 = vmatpush1.bf16.msra.mxu0 0
    %262 = vmatprep.subr.bf16.mxu0 0
    %263 = vmatpush1.bf16.msra.mxu0 0
    %264 = vmatprep.subr.bf16.mxu0 0
    %265 = vmatpush1.bf16.msra.mxu0 0
    %266 = vmatprep.subr.bf16.mxu0 0
    %267 = vmatpush1.bf16.msra.mxu0 0
    %268 = vmatprep.mubr.bf16.mxu0 0
    %269 = vmatmul.mubr.bf16.gmra.mrb[0].mxu0 %v99
    %v270 = vpop.f32.mrb[0].mxu0
    %v271 = vadd.f32 0.0, %v270
    %v272 = vpop.f32.mrb[0].mxu0
    %v273 = vpop.f32.mrb[0].mxu0
    %v274 = vadd.f32 0.0, %v273
    %v275 = vpop.f32.mrb[0].mxu0
    %276 = vdwg.mxu0
    %v277 = vpack.c.bf16 %v274, %v271
    %v279 = vunpack.c.l.b16 %v277
    %v280 = vunpack.c.h.b16 %v277
    %v281 = vpack.c.b16 %v279, %v279
    %v282 = vpack.c.b16 %v280, %v280
    %285 = vst.msk [vmem:[#allocation13] sm:$0xf] %vm150, %v281
    %286 = vst.msk [vmem:[#allocation13 + $0x4] sm:$0xf] %vm150, %v282
    // Predicated region
    $region34: #{tpu_custom_call.1} parent=1 // pred_check
      _
    $region35: #{tpu_custom_call.1} parent=1 // pred_check_branch
      %288 = sbr.rel (0) target = $region37
    $region36: #{tpu_custom_call.1} parent=1 // pred_region
      %s290 = ssub.s32 128, 128
      %291 = vsyncadd [#allocation4], %s290
      %s292 = sshll.u32 [#allocation10], 4
      %s293 = int_to_ptr.vmem [resolvable:$true] %s292
      %298 = dma.vmem_to_hbm [thread:$0]  %s293, 128, %s4, [#allocation4], 64, 64, 4
    $region37: #{tpu_custom_call.1} parent=1 // pred_fallthru
      _
    // Predicated region
    $region38: #{tpu_custom_call.1} parent=1 // pred_check
      _
    $region39: #{tpu_custom_call.1} parent=1 // pred_check_branch
      %300 = sbr.rel (0) target = $region41
    $region40: #{tpu_custom_call.1} parent=1 // pred_region
      %s302 = ssub.s32 128, 128
      %303 = vsyncadd [#allocation12], %s302
      %s304 = sshll.u32 [#allocation11], 4
      %s305 = int_to_ptr.vmem [resolvable:$true] %s304
      %310 = dma.vmem_to_hbm [thread:$0]  %s305, 128, %s5, [#allocation12], 64, 64, 4
    $region41: #{tpu_custom_call.1} parent=1 // pred_fallthru
      _
    // Predicated region
    $region42: #{tpu_custom_call.1} parent=1 // pred_check
      _
    $region43: #{tpu_custom_call.1} parent=1 // pred_check_branch
      %312 = sbr.rel (0) target = $region45
    $region44: #{tpu_custom_call.1} parent=1 // pred_region
      %s314 = ssub.s32 128, 128
      %315 = vsyncadd [#allocation12], %s314
      %s316 = sshll.u32 [#allocation13], 4
      %s317 = int_to_ptr.vmem [resolvable:$true] %s316
      %322 = dma.vmem_to_hbm [thread:$0]  %s317, 128, %s6, [#allocation12], 64, 64, 4
    $region45: #{tpu_custom_call.1} parent=1 // pred_fallthru
      _
    // Predicated region
    $region46: #{tpu_custom_call.1} parent=1 // pred_check
      _
    $region47: #{tpu_custom_call.1} parent=1 // pred_check_branch
      %324 = sbr.rel (0) target = $region49
    $region48: #{tpu_custom_call.1} parent=1 // pred_region
      %325 = dma.done [#allocation4], 128
    $region49: #{tpu_custom_call.1} parent=1 // pred_fallthru
      _
    // Predicated region
    $region50: #{tpu_custom_call.1} parent=1 // pred_check
      _
    $region51: #{tpu_custom_call.1} parent=1 // pred_check_branch
      %327 = sbr.rel (0) target = $region53
    $region52: #{tpu_custom_call.1} parent=1 // pred_region
      %328 = dma.done [#allocation12], 128
    $region53: #{tpu_custom_call.1} parent=1 // pred_fallthru
      _
    // Predicated region
    $region54: #{tpu_custom_call.1} parent=1 // pred_check
      _
    $region55: #{tpu_custom_call.1} parent=1 // pred_check_branch
      %330 = sbr.rel (0) target = $region57
    $region56: #{tpu_custom_call.1} parent=1 // pred_region
      %331 = dma.done [#allocation12], 128
    $region57: #{tpu_custom_call.1} parent=1 // pred_fallthru
      _
    %332 = vsyncpa [#allocation3], 1
    %333 = vsyncpa [#allocation6], 1
    %334 = vsyncpa [#allocation9], 1
    %335 = vsyncpa [#allocation4], 1
    %336 = vsyncpa [#allocation12], 1

</llo_original>
